<compile_context>
chip_gen: v6e
topology: v6e:2x2x1
jax: 0.10.0
libtpu: 0.0.40
codegen_flags: <defaults>
</compile_context>

<pallas_src>
import functools

import jax
import jax.numpy as jnp
from jax.experimental import pallas as pl
from jax.experimental.pallas import tpu as pltpu

LN_EPS = 1e-5  # torch.nn.LayerNorm default


def _round_up(v, m):
    return ((v + m - 1) // m) * m


def _cdiv(a, b):
    return -(-a // b)


def _ffn_kernel(x_ref, w1_ref, b1_ref, w2_ref, b2_ref, o_ref,
                xn_ref, acc_ref, *, act_dtype):
    """One (row-tile i, hidden-block j) grid step.

    grid = (n_row_tiles, n_hidden_blocks); the hidden axis is the reduction
    ("arbitrary") axis: the output tile and scratch stay resident across it.
    """
    j = pl.program_id(1)

    @pl.when(j == 0)
    def _():
        # LayerNorm over the feature axis.  f32 stats, centered two-pass
        # variance (no E[x^2]-E[x]^2 cancellation).  gamma/beta are folded
        # into W1/b1 by the wrapper, so only normalization happens here.
        x = x_ref[...].astype(jnp.float32)
        d = x.shape[-1]
        mean = jnp.sum(x, axis=-1, keepdims=True) * (1.0 / d)
        xc = x - mean
        var = jnp.sum(xc * xc, axis=-1, keepdims=True) * (1.0 / d)
        inv = jax.lax.rsqrt(var + LN_EPS)
        xn_ref[...] = (xc * inv).astype(xn_ref.dtype)
        acc_ref[...] = jnp.zeros_like(acc_ref)

    # Linear(d_model -> hidden block): bf16 operands on MXU, f32 accumulate.
    h = jnp.dot(xn_ref[...], w1_ref[...], preferred_element_type=jnp.float32)
    h = h + b1_ref[...].astype(jnp.float32)

    # SiLU epilogue: bf16 on v6e/v7x (bf16 VPU/EUP), f32 elsewhere.
    h = h.astype(act_dtype)
    h = h * jax.nn.sigmoid(h)
    # Dropout(p=0.0) is identity at inference -> no-op.
    # TODO(synk): training-mode dropout (p>0) would need pltpu.prng_* masking.

    # Linear(hidden block -> d_model), accumulated over hidden blocks.
    acc_ref[...] += jnp.dot(h.astype(jnp.bfloat16), w2_ref[...],
                            preferred_element_type=jnp.float32)

    @pl.when(j == pl.num_programs(1) - 1)
    def _():
        o_ref[...] = (acc_ref[...] + b2_ref[...].astype(jnp.float32)
                      ).astype(o_ref.dtype)


def feed_forward_module(x, gamma, beta, w1, b1, w2, b2, *, tm=512,
                        out_dtype=None):
    """x: (batch, seq, d_model) -> (batch, seq, d_model).

    w1: (d_model, hidden), w2: (hidden, d_model)  (i.e. torch weight.T).
    NOTE: for real model sizes keep d_model / hidden multiples of 128 (256 on
    v6e/v7x) so MXU tiles are full and output stores are lane-dense
    (correct either way).  Pass out_dtype=jnp.bfloat16 if the consumer
    accepts bf16 to halve the output writeback bytes.
    """
    B, S, D = x.shape
    H = w1.shape[1]
    N = B * S
    out_dtype = x.dtype if out_dtype is None else out_dtype
    x_bytes = jnp.dtype(x.dtype).itemsize
    o_bytes = jnp.dtype(out_dtype).itemsize

    # ---- fold LayerNorm affine into the first linear (exact, in f32) -------
    w1f = w1.astype(jnp.float32)
    w1_fold = gamma.astype(jnp.float32)[:, None] * w1f
    b1_fold = beta.astype(jnp.float32) @ w1f + b1.astype(jnp.float32)

    # ---- per-generation VMEM budget (v7x: 64 MiB phys -> ~48 MiB; v5e/v6e:
    #      128 MiB phys -> ~96 MiB), leaving headroom for Mosaic scratch -----
    try:
        vmem_cap = int(pltpu.get_tpu_info().vmem_capacity_bytes)
    except Exception:
        vmem_cap = 64 * 1024 * 1024
    vmem_budget = (vmem_cap * 3) // 4

    # ---- epilogue dtype per generation (bf16 VPU/EUP only on v6e/v7x) ------
    try:
        kind = jax.devices()[0].device_kind.lower()
    except Exception:
        kind = ""
    act_dtype = jnp.bfloat16 if ("v6" in kind or "v7" in kind) else jnp.float32

    # ---- hidden-dim tiling: fully resident weights if they fit, else stream
    weight_bytes = 2 * D * H * 2                       # both bf16 weights, 1 copy
    if weight_bytes <= vmem_budget // 2:
        th = H
    else:
        # double-buffered (D,th)+(th,D) bf16 blocks must fit ~half the budget
        th = (vmem_budget // 2) // (8 * D)
        th = max(128, (th // 128) * 128)
        th = min(th, _round_up(H, 128))
    n_h = _cdiv(H, th)
    H_pad = n_h * th
    if H_pad != H:  # zero-pad hidden: SiLU(0 + 0) = 0 contributes nothing -> exact
        w1_fold = jnp.pad(w1_fold, ((0, 0), (0, H_pad - H)))
        b1_fold = jnp.pad(b1_fold, ((0, H_pad - H),))
        w2 = jnp.pad(w2, ((0, H_pad - H), (0, 0)))

    # ---- row tiling: big tiles, but >=2 grid steps when possible (v7x 2 TC)
    tm_eff = min(tm, _round_up(max(N, 8), 8))
    if N >= 16:
        tm_eff = min(tm_eff, _round_up(_cdiv(N, 2), 8))

    def vmem_estimate(tm_):
        wbuf = 1 if n_h == 1 else 2
        wb = wbuf * (2 * D * th * 2 + th * 4 + D * 4)        # W1/W2 blocks + biases
        act = 2 * tm_ * D * x_bytes + 2 * tm_ * D * o_bytes  # double-buffered x/out
        scr = tm_ * D * 2 + tm_ * D * 4                      # xn (bf16) + acc (f32)
        tmp = tm_ * th * 4                                   # h temp
        return wb + act + scr + tmp

    while tm_eff > 8 and vmem_estimate(tm_eff) > vmem_budget:
        tm_eff = max(8, _round_up(tm_eff // 2, 8))

    n_pad = _round_up(N, tm_eff)
    x2 = x.reshape(N, D)
    if n_pad != N:
        x2 = jnp.pad(x2, ((0, n_pad - N), (0, 0)))

    # bf16 weights: half the HBM->VMEM bytes / VMEM footprint, bf16-native MXU.
    w1_bf = w1_fold.astype(jnp.bfloat16)
    w2_bf = w2.astype(jnp.bfloat16)
    b1_2 = b1_fold.reshape(1, H_pad)                 # stays f32 (tiny)
    b2_2 = b2.reshape(1, D).astype(jnp.float32)

    def build(single_buffer_weights):
        if single_buffer_weights and n_h == 1:
            # Constant index_map -> a second buffer buys nothing; halve
            # weight residency (biggest VMEM lever on v7x).
            w_kwargs = dict(pipeline_mode=pl.Buffered(1))
        else:
            w_kwargs = {}
        return pl.pallas_call(
            functools.partial(_ffn_kernel, act_dtype=act_dtype),
            out_shape=jax.ShapeDtypeStruct((n_pad, D), out_dtype),
            grid_spec=pltpu.PrefetchScalarGridSpec(
                num_scalar_prefetch=0,
                grid=(n_pad // tm_eff, n_h),
                in_specs=[
                    pl.BlockSpec((tm_eff, D), lambda i, j: (i, 0)),          # x rows
                    pl.BlockSpec((D, th), lambda i, j: (0, j), **w_kwargs),  # W1 blk
                    pl.BlockSpec((1, th), lambda i, j: (0, j)),              # b1 blk
                    pl.BlockSpec((th, D), lambda i, j: (j, 0), **w_kwargs),  # W2 blk
                    pl.BlockSpec((1, D), lambda i, j: (0, 0)),               # b2
                ],
                out_specs=pl.BlockSpec((tm_eff, D), lambda i, j: (i, 0)),
                scratch_shapes=[
                    pltpu.VMEM((tm_eff, D), jnp.bfloat16),  # normalized rows
                    pltpu.VMEM((tm_eff, D), jnp.float32),   # output accumulator
                ],
            ),
            compiler_params=pltpu.CompilerParams(
                dimension_semantics=("parallel", "arbitrary"),
                vmem_limit_bytes=vmem_budget,
            ),
        )

    try:
        out2 = build(True)(x2, w1_bf, b1_2, w2_bf, b2_2)
    except Exception:
        # Robustness fallback if Buffered(1) single-buffering is rejected by
        # this jax build; any genuine kernel error will still raise here.
        out2 = build(False)(x2, w1_bf, b1_2, w2_bf, b2_2)

    if n_pad != N:
        out2 = out2[:N]
    return out2.reshape(B, S, D)


def _reference(x, gamma, beta, w1, b1, w2, b2):
    mean = jnp.mean(x, axis=-1, keepdims=True)
    var = jnp.mean((x - mean) ** 2, axis=-1, keepdims=True)
    xn = (x - mean) / jnp.sqrt(var + LN_EPS) * gamma + beta
    h = xn @ w1 + b1
    h = h * jax.nn.sigmoid(h)
    return h @ w2 + b2


if __name__ == "__main__":
    batch, seq, d_model, hidden = 2, 8, 32, 64

    key = jax.random.PRNGKey(0)
    kx, kw1, kb1, kw2, kb2 = jax.random.split(key, 5)

    x = jax.random.normal(kx, (batch, seq, d_model), dtype=jnp.float32)

    # LayerNorm params (torch default init: gamma=1, beta=0)
    gamma = jnp.ones((d_model,), jnp.float32)
    beta = jnp.zeros((d_model,), jnp.float32)

    # Linear params (stored as (in, out) so the kernel computes x @ W,
    # equivalent to torch's x @ W_torch.T)
    w1 = jax.random.normal(kw1, (d_model, hidden), jnp.float32) * 0.05
    b1 = jax.random.normal(kb1, (hidden,), jnp.float32) * 0.05
    w2 = jax.random.normal(kw2, (hidden, d_model), jnp.float32) * 0.05
    b2 = jax.random.normal(kb2, (d_model,), jnp.float32) * 0.05

    out = feed_forward_module(x, gamma, beta, w1, b1, w2, b2)
    out = jax.block_until_ready(out)

    ref = _reference(x, gamma, beta, w1, b1, w2, b2)
    assert out.shape == (batch, seq, d_model)
    # bf16 GEMM operands (f32 accumulation) -> loosened tolerance vs f32 ref.
    assert jnp.allclose(out, ref, atol=2e-2, rtol=2e-2), (
        float(jnp.max(jnp.abs(out - ref))))

    print("KERNEL_OK")
</pallas_src>

<mosaic_0001>
module attributes {stable_mosaic.version = 11 : i64} {
  func.func @_ffn_kernel(%arg0: i32, %arg1: i32, %arg2: memref<8x32xf32, #tpu.memory_space<vmem>>, %arg3: memref<32x64xbf16, #tpu.memory_space<vmem>>, %arg4: memref<1x64xf32, #tpu.memory_space<vmem>>, %arg5: memref<64x32xbf16, #tpu.memory_space<vmem>>, %arg6: memref<1x32xf32, #tpu.memory_space<vmem>>, %arg7: memref<8x32xf32, #tpu.memory_space<vmem>>, %arg8: memref<8x32xbf16, #tpu.memory_space<vmem>>, %arg9: memref<8x32xf32, #tpu.memory_space<vmem>>) attributes {dimension_semantics = [#tpu.dimension_semantics<parallel>, #tpu.dimension_semantics<arbitrary>], iteration_bounds = array<i64: 2, 1>, scalar_prefetch = 0 : i64, scratch_operands = 2 : i64, tpu.core_type = #tpu.core_type<tc>, window_params = [{transform_indices = @transform_0, window_bounds = array<i64: 8, 32>}, {pipeline_mode = #tpu.pipeline_mode<synchronous>, transform_indices = @transform_1, window_bounds = array<i64: 32, 64>}, {transform_indices = @transform_2, window_bounds = array<i64: 1, 64>}, {pipeline_mode = #tpu.pipeline_mode<synchronous>, transform_indices = @transform_3, window_bounds = array<i64: 64, 32>}, {pipeline_mode = #tpu.pipeline_mode<synchronous>, transform_indices = @transform_4, window_bounds = array<i64: 1, 32>}, {transform_indices = @transform_5, window_bounds = array<i64: 8, 32>}]} {
    %c0_i32 = arith.constant 0 : i32
    %0 = arith.cmpi eq, %arg1, %c0_i32 : i32
    %1 = arith.extui %0 : i1 to i32
    %c0_i32_0 = arith.constant 0 : i32
    %2 = arith.cmpi ne, %1, %c0_i32_0 : i32
    scf.if %2 {
      %c0_16 = arith.constant 0 : index
      %c0_17 = arith.constant 0 : index
      %24 = vector.load %arg2[%c0_16, %c0_17] : memref<8x32xf32, #tpu.memory_space<vmem>>, vector<8x32xf32>
      %cst_18 = arith.constant dense<0.000000e+00> : vector<8xf32>
      %25 = vector.multi_reduction <add>, %24, %cst_18 [1] : vector<8x32xf32> to vector<8xf32>
      %26 = vector.shape_cast %25 : vector<8xf32> to vector<8x1xf32>
      %cst_19 = arith.constant 3.125000e-02 : f32
      %27 = vector.broadcast %cst_19 : f32 to vector<8x1xf32>
      %28 = arith.mulf %26, %27 : vector<8x1xf32>
      %29 = vector.broadcast %28 : vector<8x1xf32> to vector<8x32xf32>
      %30 = arith.subf %24, %29 : vector<8x32xf32>
      %31 = arith.mulf %30, %30 : vector<8x32xf32>
      %cst_20 = arith.constant dense<0.000000e+00> : vector<8xf32>
      %32 = vector.multi_reduction <add>, %31, %cst_20 [1] : vector<8x32xf32> to vector<8xf32>
      %33 = vector.shape_cast %32 : vector<8xf32> to vector<8x1xf32>
      %cst_21 = arith.constant 3.125000e-02 : f32
      %34 = vector.broadcast %cst_21 : f32 to vector<8x1xf32>
      %35 = arith.mulf %33, %34 : vector<8x1xf32>
      %cst_22 = arith.constant 9.99999974E-6 : f32
      %36 = vector.broadcast %cst_22 : f32 to vector<8x1xf32>
      %37 = arith.addf %35, %36 : vector<8x1xf32>
      %38 = math.rsqrt %37 : vector<8x1xf32>
      %39 = vector.broadcast %38 : vector<8x1xf32> to vector<8x32xf32>
      %40 = arith.mulf %30, %39 : vector<8x32xf32>
      %41 = arith.truncf %40 : vector<8x32xf32> to vector<8x32xbf16>
      %c0_23 = arith.constant 0 : index
      %c0_24 = arith.constant 0 : index
      %42 = vector.load %arg8[%c0_23, %c0_24] : memref<8x32xbf16, #tpu.memory_space<vmem>>, vector<8x32xbf16>
      tpu.vector_store %arg8[%c0_23, %c0_24], %41 {strides = array<i32>} : memref<8x32xbf16, #tpu.memory_space<vmem>>, vector<8x32xbf16>,
      %cst_25 = arith.constant 0.000000e+00 : f32
      %43 = vector.broadcast %cst_25 : f32 to vector<8x32xf32>
      %c0_26 = arith.constant 0 : index
      %c0_27 = arith.constant 0 : index
      %44 = vector.load %arg9[%c0_26, %c0_27] : memref<8x32xf32, #tpu.memory_space<vmem>>, vector<8x32xf32>
      tpu.vector_store %arg9[%c0_26, %c0_27], %43 {strides = array<i32>} : memref<8x32xf32, #tpu.memory_space<vmem>>, vector<8x32xf32>,
    } else {
    }
    %c0 = arith.constant 0 : index
    %c0_1 = arith.constant 0 : index
    %3 = vector.load %arg8[%c0, %c0_1] : memref<8x32xbf16, #tpu.memory_space<vmem>>, vector<8x32xbf16>
    %c0_2 = arith.constant 0 : index
    %c0_3 = arith.constant 0 : index
    %4 = vector.load %arg3[%c0_2, %c0_3] : memref<32x64xbf16, #tpu.memory_space<vmem>>, vector<32x64xbf16>
    %cst = arith.constant dense<0.000000e+00> : vector<8x64xf32>
    %5 = tpu.matmul %3, %4, %cst {dimension_numbers = #tpu.dot_dimension_numbers<[1], [0], [0], [1], [0, 0, 1, 1], [], []>} : vector<8x32xbf16>, vector<32x64xbf16>, vector<8x64xf32> -> vector<8x64xf32>
    %c0_4 = arith.constant 0 : index
    %c0_5 = arith.constant 0 : index
    %6 = vector.load %arg4[%c0_4, %c0_5] : memref<1x64xf32, #tpu.memory_space<vmem>>, vector<1x64xf32>
    %7 = vector.broadcast %6 : vector<1x64xf32> to vector<8x64xf32>
    %8 = arith.addf %5, %7 : vector<8x64xf32>
    %9 = arith.negf %8 : vector<8x64xf32>
    %10 = math.exp %9 : vector<8x64xf32>
    %cst_6 = arith.constant 1.000000e+00 : f32
    %11 = vector.broadcast %cst_6 : f32 to vector<8x64xf32>
    %12 = arith.addf %11, %10 : vector<8x64xf32>
    %13 = arith.divf %11, %12 : vector<8x64xf32>
    %14 = arith.mulf %8, %13 : vector<8x64xf32>
    %c0_7 = arith.constant 0 : index
    %c0_8 = arith.constant 0 : index
    %15 = vector.load %arg9[%c0_7, %c0_8] : memref<8x32xf32, #tpu.memory_space<vmem>>, vector<8x32xf32>
    %16 = arith.truncf %14 : vector<8x64xf32> to vector<8x64xbf16>
    %c0_9 = arith.constant 0 : index
    %c0_10 = arith.constant 0 : index
    %17 = vector.load %arg5[%c0_9, %c0_10] : memref<64x32xbf16, #tpu.memory_space<vmem>>, vector<64x32xbf16>
    %cst_11 = arith.constant dense<0.000000e+00> : vector<8x32xf32>
    %18 = tpu.matmul %16, %17, %cst_11 {dimension_numbers = #tpu.dot_dimension_numbers<[1], [0], [0], [1], [0, 0, 1, 1], [], []>} : vector<8x64xbf16>, vector<64x32xbf16>, vector<8x32xf32> -> vector<8x32xf32>
    %19 = arith.addf %15, %18 : vector<8x32xf32>
    %c0_12 = arith.constant 0 : index
    %c0_13 = arith.constant 0 : index
    %20 = vector.load %arg9[%c0_12, %c0_13] : memref<8x32xf32, #tpu.memory_space<vmem>>, vector<8x32xf32>
    tpu.vector_store %arg9[%c0_12, %c0_13], %19 {strides = array<i32>} : memref<8x32xf32, #tpu.memory_space<vmem>>, vector<8x32xf32>,
    %c0_i32_14 = arith.constant 0 : i32
    %21 = arith.cmpi eq, %arg1, %c0_i32_14 : i32
    %22 = arith.extui %21 : i1 to i32
    %c0_i32_15 = arith.constant 0 : i32
    %23 = arith.cmpi ne, %22, %c0_i32_15 : i32
    scf.if %23 {
      %c0_16 = arith.constant 0 : index
      %c0_17 = arith.constant 0 : index
      %24 = vector.load %arg9[%c0_16, %c0_17] : memref<8x32xf32, #tpu.memory_space<vmem>>, vector<8x32xf32>
      %c0_18 = arith.constant 0 : index
      %c0_19 = arith.constant 0 : index
      %25 = vector.load %arg6[%c0_18, %c0_19] : memref<1x32xf32, #tpu.memory_space<vmem>>, vector<1x32xf32>
      %26 = vector.broadcast %25 : vector<1x32xf32> to vector<8x32xf32>
      %27 = arith.addf %24, %26 : vector<8x32xf32>
      %c0_20 = arith.constant 0 : index
      %c0_21 = arith.constant 0 : index
      %28 = vector.load %arg7[%c0_20, %c0_21] : memref<8x32xf32, #tpu.memory_space<vmem>>, vector<8x32xf32>
      tpu.vector_store %arg7[%c0_20, %c0_21], %27 {strides = array<i32>} : memref<8x32xf32, #tpu.memory_space<vmem>>, vector<8x32xf32>,
    } else {
    }
    return
  }
  func.func @transform_0(%arg0: i32, %arg1: i32) -> (i32, i32) {
    %c0_i32 = arith.constant 0 : i32
    %c0_i32_0 = arith.constant 0 : i32
    return %arg0, %c0_i32 : i32, i32
  }
  func.func @transform_1(%arg0: i32, %arg1: i32) -> (i32, i32) {
    %c0_i32 = arith.constant 0 : i32
    %c0_i32_0 = arith.constant 0 : i32
    return %c0_i32, %arg1 : i32, i32
  }
  func.func @transform_2(%arg0: i32, %arg1: i32) -> (i32, i32) {
    %c0_i32 = arith.constant 0 : i32
    %c0_i32_0 = arith.constant 0 : i32
    return %c0_i32, %arg1 : i32, i32
  }
  func.func @transform_3(%arg0: i32, %arg1: i32) -> (i32, i32) {
    %c0_i32 = arith.constant 0 : i32
    %c0_i32_0 = arith.constant 0 : i32
    return %arg1, %c0_i32 : i32, i32
  }
  func.func @transform_4(%arg0: i32, %arg1: i32) -> (i32, i32) {
    %c0_i32 = arith.constant 0 : i32
    %c0_i32_0 = arith.constant 0 : i32
    %c0_i32_1 = arith.constant 0 : i32
    return %c0_i32, %c0_i32_0 : i32, i32
  }
  func.func @transform_5(%arg0: i32, %arg1: i32) -> (i32, i32) {
    %c0_i32 = arith.constant 0 : i32
    %c0_i32_0 = arith.constant 0 : i32
    return %arg0, %c0_i32 : i32, i32
  }
}

module attributes {stable_mosaic.version = 11 : i64} {
  func.func @_ffn_kernel(%arg0: i32, %arg1: i32, %arg2: memref<8x32xf32, #tpu.memory_space<vmem>>, %arg3: memref<32x64xbf16, #tpu.memory_space<vmem>>, %arg4: memref<1x64xf32, #tpu.memory_space<vmem>>, %arg5: memref<64x32xbf16, #tpu.memory_space<vmem>>, %arg6: memref<1x32xf32, #tpu.memory_space<vmem>>, %arg7: memref<8x32xf32, #tpu.memory_space<vmem>>, %arg8: memref<8x32xbf16, #tpu.memory_space<vmem>>, %arg9: memref<8x32xf32, #tpu.memory_space<vmem>>) attributes {dimension_semantics = [#tpu.dimension_semantics<parallel>, #tpu.dimension_semantics<arbitrary>], iteration_bounds = array<i64: 2, 1>, scalar_prefetch = 0 : i64, scratch_operands = 2 : i64, tpu.core_type = #tpu.core_type<tc>, window_params = [{transform_indices = @transform_0, window_bounds = array<i64: 8, 32>}, {transform_indices = @transform_1, window_bounds = array<i64: 32, 64>}, {transform_indices = @transform_2, window_bounds = array<i64: 1, 64>}, {transform_indices = @transform_3, window_bounds = array<i64: 64, 32>}, {pipeline_mode = #tpu.pipeline_mode<synchronous>, transform_indices = @transform_4, window_bounds = array<i64: 1, 32>}, {transform_indices = @transform_5, window_bounds = array<i64: 8, 32>}]} {
    %c0_i32 = arith.constant 0 : i32
    %0 = arith.cmpi eq, %arg1, %c0_i32 : i32
    %1 = arith.extui %0 : i1 to i32
    %c0_i32_0 = arith.constant 0 : i32
    %2 = arith.cmpi ne, %1, %c0_i32_0 : i32
    scf.if %2 {
      %c0_16 = arith.constant 0 : index
      %c0_17 = arith.constant 0 : index
      %24 = vector.load %arg2[%c0_16, %c0_17] : memref<8x32xf32, #tpu.memory_space<vmem>>, vector<8x32xf32>
      %cst_18 = arith.constant dense<0.000000e+00> : vector<8xf32>
      %25 = vector.multi_reduction <add>, %24, %cst_18 [1] : vector<8x32xf32> to vector<8xf32>
      %26 = vector.shape_cast %25 : vector<8xf32> to vector<8x1xf32>
      %cst_19 = arith.constant 3.125000e-02 : f32
      %27 = vector.broadcast %cst_19 : f32 to vector<8x1xf32>
      %28 = arith.mulf %26, %27 : vector<8x1xf32>
      %29 = vector.broadcast %28 : vector<8x1xf32> to vector<8x32xf32>
      %30 = arith.subf %24, %29 : vector<8x32xf32>
      %31 = arith.mulf %30, %30 : vector<8x32xf32>
      %cst_20 = arith.constant dense<0.000000e+00> : vector<8xf32>
      %32 = vector.multi_reduction <add>, %31, %cst_20 [1] : vector<8x32xf32> to vector<8xf32>
      %33 = vector.shape_cast %32 : vector<8xf32> to vector<8x1xf32>
      %cst_21 = arith.constant 3.125000e-02 : f32
      %34 = vector.broadcast %cst_21 : f32 to vector<8x1xf32>
      %35 = arith.mulf %33, %34 : vector<8x1xf32>
      %cst_22 = arith.constant 9.99999974E-6 : f32
      %36 = vector.broadcast %cst_22 : f32 to vector<8x1xf32>
      %37 = arith.addf %35, %36 : vector<8x1xf32>
      %38 = math.rsqrt %37 : vector<8x1xf32>
      %39 = vector.broadcast %38 : vector<8x1xf32> to vector<8x32xf32>
      %40 = arith.mulf %30, %39 : vector<8x32xf32>
      %41 = arith.truncf %40 : vector<8x32xf32> to vector<8x32xbf16>
      %c0_23 = arith.constant 0 : index
      %c0_24 = arith.constant 0 : index
      %42 = vector.load %arg8[%c0_23, %c0_24] : memref<8x32xbf16, #tpu.memory_space<vmem>>, vector<8x32xbf16>
      tpu.vector_store %arg8[%c0_23, %c0_24], %41 {strides = array<i32>} : memref<8x32xbf16, #tpu.memory_space<vmem>>, vector<8x32xbf16>,
      %cst_25 = arith.constant 0.000000e+00 : f32
      %43 = vector.broadcast %cst_25 : f32 to vector<8x32xf32>
      %c0_26 = arith.constant 0 : index
      %c0_27 = arith.constant 0 : index
      %44 = vector.load %arg9[%c0_26, %c0_27] : memref<8x32xf32, #tpu.memory_space<vmem>>, vector<8x32xf32>
      tpu.vector_store %arg9[%c0_26, %c0_27], %43 {strides = array<i32>} : memref<8x32xf32, #tpu.memory_space<vmem>>, vector<8x32xf32>,
    } else {
    }
    %c0 = arith.constant 0 : index
    %c0_1 = arith.constant 0 : index
    %3 = vector.load %arg8[%c0, %c0_1] : memref<8x32xbf16, #tpu.memory_space<vmem>>, vector<8x32xbf16>
    %c0_2 = arith.constant 0 : index
    %c0_3 = arith.constant 0 : index
    %4 = vector.load %arg3[%c0_2, %c0_3] : memref<32x64xbf16, #tpu.memory_space<vmem>>, vector<32x64xbf16>
    %cst = arith.constant dense<0.000000e+00> : vector<8x64xf32>
    %5 = tpu.matmul %3, %4, %cst {dimension_numbers = #tpu.dot_dimension_numbers<[1], [0], [0], [1], [0, 0, 1, 1], [], []>} : vector<8x32xbf16>, vector<32x64xbf16>, vector<8x64xf32> -> vector<8x64xf32>
    %c0_4 = arith.constant 0 : index
    %c0_5 = arith.constant 0 : index
    %6 = vector.load %arg4[%c0_4, %c0_5] : memref<1x64xf32, #tpu.memory_space<vmem>>, vector<1x64xf32>
    %7 = vector.broadcast %6 : vector<1x64xf32> to vector<8x64xf32>
    %8 = arith.addf %5, %7 : vector<8x64xf32>
    %9 = arith.negf %8 : vector<8x64xf32>
    %10 = math.exp %9 : vector<8x64xf32>
    %cst_6 = arith.constant 1.000000e+00 : f32
    %11 = vector.broadcast %cst_6 : f32 to vector<8x64xf32>
    %12 = arith.addf %11, %10 : vector<8x64xf32>
    %13 = arith.divf %11, %12 : vector<8x64xf32>
    %14 = arith.mulf %8, %13 : vector<8x64xf32>
    %c0_7 = arith.constant 0 : index
    %c0_8 = arith.constant 0 : index
    %15 = vector.load %arg9[%c0_7, %c0_8] : memref<8x32xf32, #tpu.memory_space<vmem>>, vector<8x32xf32>
    %16 = arith.truncf %14 : vector<8x64xf32> to vector<8x64xbf16>
    %c0_9 = arith.constant 0 : index
    %c0_10 = arith.constant 0 : index
    %17 = vector.load %arg5[%c0_9, %c0_10] : memref<64x32xbf16, #tpu.memory_space<vmem>>, vector<64x32xbf16>
    %cst_11 = arith.constant dense<0.000000e+00> : vector<8x32xf32>
    %18 = tpu.matmul %16, %17, %cst_11 {dimension_numbers = #tpu.dot_dimension_numbers<[1], [0], [0], [1], [0, 0, 1, 1], [], []>} : vector<8x64xbf16>, vector<64x32xbf16>, vector<8x32xf32> -> vector<8x32xf32>
    %19 = arith.addf %15, %18 : vector<8x32xf32>
    %c0_12 = arith.constant 0 : index
    %c0_13 = arith.constant 0 : index
    %20 = vector.load %arg9[%c0_12, %c0_13] : memref<8x32xf32, #tpu.memory_space<vmem>>, vector<8x32xf32>
    tpu.vector_store %arg9[%c0_12, %c0_13], %19 {strides = array<i32>} : memref<8x32xf32, #tpu.memory_space<vmem>>, vector<8x32xf32>,
    %c0_i32_14 = arith.constant 0 : i32
    %21 = arith.cmpi eq, %arg1, %c0_i32_14 : i32
    %22 = arith.extui %21 : i1 to i32
    %c0_i32_15 = arith.constant 0 : i32
    %23 = arith.cmpi ne, %22, %c0_i32_15 : i32
    scf.if %23 {
      %c0_16 = arith.constant 0 : index
      %c0_17 = arith.constant 0 : index
      %24 = vector.load %arg9[%c0_16, %c0_17] : memref<8x32xf32, #tpu.memory_space<vmem>>, vector<8x32xf32>
      %c0_18 = arith.constant 0 : index
      %c0_19 = arith.constant 0 : index
      %25 = vector.load %arg6[%c0_18, %c0_19] : memref<1x32xf32, #tpu.memory_space<vmem>>, vector<1x32xf32>
      %26 = vector.broadcast %25 : vector<1x32xf32> to vector<8x32xf32>
      %27 = arith.addf %24, %26 : vector<8x32xf32>
      %c0_20 = arith.constant 0 : index
      %c0_21 = arith.constant 0 : index
      %28 = vector.load %arg7[%c0_20, %c0_21] : memref<8x32xf32, #tpu.memory_space<vmem>>, vector<8x32xf32>
      tpu.vector_store %arg7[%c0_20, %c0_21], %27 {strides = array<i32>} : memref<8x32xf32, #tpu.memory_space<vmem>>, vector<8x32xf32>,
    } else {
    }
    return
  }
  func.func @transform_0(%arg0: i32, %arg1: i32) -> (i32, i32) {
    %c0_i32 = arith.constant 0 : i32
    %c0_i32_0 = arith.constant 0 : i32
    return %arg0, %c0_i32 : i32, i32
  }
  func.func @transform_1(%arg0: i32, %arg1: i32) -> (i32, i32) {
    %c0_i32 = arith.constant 0 : i32
    %c0_i32_0 = arith.constant 0 : i32
    return %c0_i32, %arg1 : i32, i32
  }
  func.func @transform_2(%arg0: i32, %arg1: i32) -> (i32, i32) {
    %c0_i32 = arith.constant 0 : i32
    %c0_i32_0 = arith.constant 0 : i32
    return %c0_i32, %arg1 : i32, i32
  }
  func.func @transform_3(%arg0: i32, %arg1: i32) -> (i32, i32) {
    %c0_i32 = arith.constant 0 : i32
    %c0_i32_0 = arith.constant 0 : i32
    return %arg1, %c0_i32 : i32, i32
  }
  func.func @transform_4(%arg0: i32, %arg1: i32) -> (i32, i32) {
    %c0_i32 = arith.constant 0 : i32
    %c0_i32_0 = arith.constant 0 : i32
    %c0_i32_1 = arith.constant 0 : i32
    return %c0_i32, %c0_i32_0 : i32, i32
  }
  func.func @transform_5(%arg0: i32, %arg1: i32) -> (i32, i32) {
    %c0_i32 = arith.constant 0 : i32
    %c0_i32_0 = arith.constant 0 : i32
    return %arg0, %c0_i32 : i32, i32
  }
}

</mosaic_0001>

<llo_original>
// kernel: tpu_custom_call.1
$region0: #{tpu_custom_call.1}
  #allocation0 [shape = 'u32[]', space=smem, size = 0x4, offset = 0x4, fixed_abs, tag = 'smem constant byte address 0x4 - core index']
  #allocation1 [shape = 'u32[144,128]{1,0:T(1,128)}', space=vmem, size = 0x12000, scoped, tag = 'internal scratch']
  #allocation2 [shape = 'bf16[8,32]{1,0:T(8,128)(2,1)}', space=vmem, size = 0x800, scoped, tag = 'scratch operand']
  #allocation3 [shape = 'f32[8,32]{1,0:T(8,128)}', space=vmem, size = 0x1000, scoped, tag = 'scratch operand']
  %s0 = inlined_call_operand.vmem [shape: f32[16,32], index: 0, kind: input, shape index: {}]
  %s1 = inlined_call_operand.vmem [shape: bf16[32,64], index: 1, kind: input, shape index: {}]
  %s2 = inlined_call_operand.vmem [shape: f32[1,64], index: 2, kind: input, shape index: {}]
  %s3 = inlined_call_operand.vmem [shape: bf16[64,32], index: 3, kind: input, shape index: {}]
  %s4 = inlined_call_operand.vmem [shape: f32[1,32], index: 4, kind: input, shape index: {}]
  %s5 = inlined_call_operand.hbm [shape: f32[16,32], index: 5, kind: output, shape index: {}]
  %s6 = sld [smem:[#allocation0]]
  $region61: #{tpu_custom_call.1} parent=0
    _
  %s8 = ssub.s32 1, %s6
  %s9 = scalar_select 0, %s8, %s6
  $region1: #{tpu_custom_call.1} parent=0
    #allocation4 [shape = 'u8[8192]{0}', space=vmem, size = 0x2000, scoped, tag = 'output window, operand 0']
    #allocation5 [shape = 's32[2]{0}', space=sflag, size = 0x8, scoped, tag = 'scoped memory for tpu_custom_call.1']
    %10 = vsyncpa [#allocation5], 0
    %s11 = scalar_lea.sflag [#allocation5], 1
    %12 = vsyncpa %s11, 0
    loop: start=0, step=1, limit=4
    $region2: #{tpu_custom_call.1} parent=1 // loop_pre_header
      _
    $region3: #{tpu_custom_call.1} parent=1 // loop_header
      %s14 = sphi 0, %s18
      %p15 = scmp.ge.s32.totalorder %s14, 4
      %s21 = sphi 0, %s33
      %s22 = sphi 0, %s29
      %s23 = sphi 0, %s21
      %s24 = sphi 0, %s22
      %s25 = sphi 0, %s23
      %s26 = sphi 0, %s24
      %s36 = sphi 0, %s38
      %s39 = sphi 0, %s36
      %s40 = sphi 0, %s39
      %s56 = sphi 0, %s40
      %s62 = sphi 0, %s64
      %s65 = sphi 0, %s62
      %s66 = sphi 0, %s65
      %s82 = sphi 0, %s66
      %s88 = sphi 0, %s90
      %s91 = sphi 0, %s88
      %s92 = sphi 0, %s91
      %s108 = sphi 0, %s92
      %s114 = sphi 0, %s116
      %s117 = sphi 0, %s114
      %s118 = sphi 0, %s117
      %s134 = sphi 0, %s118
      %s138 = sphi 0, %s138
      %s140 = sphi 0, %s138
      %s141 = sphi 0, %s140
      %s155 = sphi 0, %s141
      %s161 = sphi 0, %s163
      %s164 = sphi 0, %s161
      %s165 = sphi 0, %s164
      %s181 = sphi 0, %s165
    $region4: #{tpu_custom_call.1} parent=1 // loop_header_branch
      %17 = sbr.rel (%p15) target = $region8
    $region5: #{tpu_custom_call.1} parent=1 // loop_body
      %s19 = ssub.s32 %s14, 1
      %s20 = ssub.s32 %s14, 2
      %s27 = sadd.s32 1, %s22
      %p28 = scmp.ge.s32.totalorder %s27, 1
      %s29 = scalar_select %p28, 0, %s27
      %s30 = sadd.s32 1, %s21
      %s31 = scalar_select %p28, %s30, %s21
      %p32 = scmp.ge.s32.totalorder %s31, 2
      %s33 = scalar_select %p32, 0, %s31
      %s34 = ssub.s32 %s21, %s33
      %p35 = scmp.eq.s32.totalorder %s34, 0
      %s37 = sadd.s32 %s36, 1
      %s38 = scalar_select %p35, %s36, %s37
      %p41 = pneg %p35
      %p42 = scmp.eq.s32.totalorder %s14, 1
      %p43 = por %p41, %p42
      %p44 = scmp.ne.s32.totalorder %s36, %s39
      %p45 = scmp.eq.s32.totalorder %s14, 0
      %p46 = por %p44, %p45
      %p47 = scmp.ne.s32.totalorder %s36, %s39
      %p48 = scmp.eq.s32.totalorder %s19, 1
      %p49 = por %p47, %p48
      %p50 = scmp.ne.s32.totalorder %s39, %s40
      %p51 = scmp.eq.s32.totalorder %s19, 0
      %p52 = por %p50, %p51
      %p53 = scmp.ne.s32.totalorder %s39, %s40
      %p54 = scmp.eq.s32.totalorder %s20, 1
      %p55 = por %p53, %p54
      %p57 = scmp.ne.s32.totalorder %s40, %s56
      %p58 = scmp.eq.s32.totalorder %s20, 0
      %p59 = por %p57, %p58
      %s60 = ssub.s32 %s22, %s29
      %p61 = scmp.eq.s32.totalorder %s60, 0
      %s63 = sadd.s32 %s62, 1
      %s64 = scalar_select %p61, %s62, %s63
      %p67 = pneg %p61
      %p68 = scmp.eq.s32.totalorder %s14, 1
      %p69 = por %p67, %p68
      %p70 = scmp.ne.s32.totalorder %s62, %s65
      %p71 = scmp.eq.s32.totalorder %s14, 0
      %p72 = por %p70, %p71
      %p73 = scmp.ne.s32.totalorder %s62, %s65
      %p74 = scmp.eq.s32.totalorder %s19, 1
      %p75 = por %p73, %p74
      %p76 = scmp.ne.s32.totalorder %s65, %s66
      %p77 = scmp.eq.s32.totalorder %s19, 0
      %p78 = por %p76, %p77
      %p79 = scmp.ne.s32.totalorder %s65, %s66
      %p80 = scmp.eq.s32.totalorder %s20, 1
      %p81 = por %p79, %p80
      %p83 = scmp.ne.s32.totalorder %s66, %s82
      %p84 = scmp.eq.s32.totalorder %s20, 0
      %p85 = por %p83, %p84
      %s86 = ssub.s32 %s22, %s29
      %p87 = scmp.eq.s32.totalorder %s86, 0
      %s89 = sadd.s32 %s88, 1
      %s90 = scalar_select %p87, %s88, %s89
      %p93 = pneg %p87
      %p94 = scmp.eq.s32.totalorder %s14, 1
      %p95 = por %p93, %p94
      %p96 = scmp.ne.s32.totalorder %s88, %s91
      %p97 = scmp.eq.s32.totalorder %s14, 0
      %p98 = por %p96, %p97
      %p99 = scmp.ne.s32.totalorder %s88, %s91
      %p100 = scmp.eq.s32.totalorder %s19, 1
      %p101 = por %p99, %p100
      %p102 = scmp.ne.s32.totalorder %s91, %s92
      %p103 = scmp.eq.s32.totalorder %s19, 0
      %p104 = por %p102, %p103
      %p105 = scmp.ne.s32.totalorder %s91, %s92
      %p106 = scmp.eq.s32.totalorder %s20, 1
      %p107 = por %p105, %p106
      %p109 = scmp.ne.s32.totalorder %s92, %s108
      %p110 = scmp.eq.s32.totalorder %s20, 0
      %p111 = por %p109, %p110
      %s112 = ssub.s32 %s22, %s29
      %p113 = scmp.eq.s32.totalorder %s112, 0
      %s115 = sadd.s32 %s114, 1
      %s116 = scalar_select %p113, %s114, %s115
      %p119 = pneg %p113
      %p120 = scmp.eq.s32.totalorder %s14, 1
      %p121 = por %p119, %p120
      %p122 = scmp.ne.s32.totalorder %s114, %s117
      %p123 = scmp.eq.s32.totalorder %s14, 0
      %p124 = por %p122, %p123
      %p125 = scmp.ne.s32.totalorder %s114, %s117
      %p126 = scmp.eq.s32.totalorder %s19, 1
      %p127 = por %p125, %p126
      %p128 = scmp.ne.s32.totalorder %s117, %s118
      %p129 = scmp.eq.s32.totalorder %s19, 0
      %p130 = por %p128, %p129
      %p131 = scmp.ne.s32.totalorder %s117, %s118
      %p132 = scmp.eq.s32.totalorder %s20, 1
      %p133 = por %p131, %p132
      %p135 = scmp.ne.s32.totalorder %s118, %s134
      %p136 = scmp.eq.s32.totalorder %s20, 0
      %p137 = por %p135, %p136
      %s139 = sadd.s32 %s138, 1
      %p142 = scmp.eq.s32.totalorder %s14, 1
      %p143 = scmp.ne.s32.totalorder %s138, %s140
      %p144 = scmp.eq.s32.totalorder %s14, 0
      %p145 = por %p143, %p144
      %p146 = scmp.ne.s32.totalorder %s138, %s140
      %p147 = scmp.eq.s32.totalorder %s19, 1
      %p148 = por %p146, %p147
      %p149 = scmp.ne.s32.totalorder %s140, %s141
      %p150 = scmp.eq.s32.totalorder %s19, 0
      %p151 = por %p149, %p150
      %p152 = scmp.ne.s32.totalorder %s140, %s141
      %p153 = scmp.eq.s32.totalorder %s20, 1
      %p154 = por %p152, %p153
      %p156 = scmp.ne.s32.totalorder %s141, %s155
      %p157 = scmp.eq.s32.totalorder %s20, 0
      %p158 = por %p156, %p157
      %s159 = ssub.s32 %s21, %s33
      %p160 = scmp.eq.s32.totalorder %s159, 0
      %s162 = sadd.s32 %s161, 1
      %s163 = scalar_select %p160, %s161, %s162
      %p166 = pneg %p160
      %p167 = scmp.eq.s32.totalorder %s14, 1
      %p168 = por %p166, %p167
      %p169 = scmp.ne.s32.totalorder %s161, %s164
      %p170 = scmp.eq.s32.totalorder %s14, 0
      %p171 = por %p169, %p170
      %p172 = scmp.ne.s32.totalorder %s161, %s164
      %p173 = scmp.eq.s32.totalorder %s19, 1
      %p174 = por %p172, %p173
      %p175 = scmp.ne.s32.totalorder %s164, %s165
      %p176 = scmp.eq.s32.totalorder %s19, 0
      %p177 = por %p175, %p176
      %p178 = scmp.ne.s32.totalorder %s164, %s165
      %p179 = scmp.eq.s32.totalorder %s20, 1
      %p180 = por %p178, %p179
      %p182 = scmp.ne.s32.totalorder %s165, %s181
      %p183 = scmp.eq.s32.totalorder %s20, 0
      %p184 = por %p182, %p183
      %p185 = scmp.le.s32.totalorder 1, %s14
      %p186 = scmp.lt.s32.totalorder %s14, 3
      %p187 = pnand %p185, %p186
      %p188 = pneg %p187
      // Predicated region
      $region9: #{tpu_custom_call.1} parent=5 // pred_check
        _
      $region10: #{tpu_custom_call.1} parent=5 // pred_check_branch
        %190 = sbr.rel (%p187) target = $region12
      $region11: #{tpu_custom_call.1} parent=5 // pred_region
        %s191 = ssub.s32 %s14, 1
        // Predicated region
        $region13: #{tpu_custom_call.1} parent=11 // pred_check
          %p192 = pneg %p78
        $region14: #{tpu_custom_call.1} parent=11 // pred_check_branch
          %194 = sbr.rel (%p192) target = $region16
        $region15: #{tpu_custom_call.1} parent=11 // pred_region
          %p195 = scmp.lt.s32.totalorder %s24, 0
          %s196 = scalar_select %p195, %s24, 0
          %s197 = smul.addr %s196, 4
          %s198 = scalar_lea.vmem %s1, %s197
        $region16: #{tpu_custom_call.1} parent=11 // pred_fallthru
          _
        // Predicated region
        $region17: #{tpu_custom_call.1} parent=11 // pred_check
          %p199 = pneg %p104
        $region18: #{tpu_custom_call.1} parent=11 // pred_check_branch
          %201 = sbr.rel (%p199) target = $region20
        $region19: #{tpu_custom_call.1} parent=11 // pred_region
          %p202 = scmp.lt.s32.totalorder %s24, 0
          %s203 = scalar_select %p202, %s24, 0
          %s204 = scalar_lea.vmem %s2, %s203
        $region20: #{tpu_custom_call.1} parent=11 // pred_fallthru
          _
        // Predicated region
        $region21: #{tpu_custom_call.1} parent=11 // pred_check
          %p205 = pneg %p130
        $region22: #{tpu_custom_call.1} parent=11 // pred_check_branch
          %207 = sbr.rel (%p205) target = $region24
        $region23: #{tpu_custom_call.1} parent=11 // pred_region
          %s208 = smul.u32 8, %s24
          %p209 = scmp.lt.s32.totalorder %s208, 7
          %s210 = scalar_select %p209, %s208, 7
          %s211 = smul.addr %s210, 4
          %s212 = scalar_lea.vmem %s3, %s211
          %s213 = smul.u32 8, %s24
        $region24: #{tpu_custom_call.1} parent=11 // pred_fallthru
          _
        // Predicated region
        $region25: #{tpu_custom_call.1} parent=11 // pred_check
          %p214 = pneg %p151
        $region26: #{tpu_custom_call.1} parent=11 // pred_check_branch
          %216 = sbr.rel (%p214) target = $region28
        $region27: #{tpu_custom_call.1} parent=11 // pred_region
          _
        $region28: #{tpu_custom_call.1} parent=11 // pred_fallthru
          _
      $region12: #{tpu_custom_call.1} parent=5 // pred_fallthru
        _
      %p217 = scmp.lt.s32.totalorder %s14, 2
      // Predicated region
      $region29: #{tpu_custom_call.1} parent=5 // pred_check
        %p218 = pneg %p217
      $region30: #{tpu_custom_call.1} parent=5 // pred_check_branch
        %220 = sbr.rel (%p218) target = $region32
      $region31: #{tpu_custom_call.1} parent=5 // pred_region
        // Predicated region
        $region33: #{tpu_custom_call.1} parent=31 // pred_check
          %p221 = pneg %p46
        $region34: #{tpu_custom_call.1} parent=31 // pred_check_branch
          %223 = sbr.rel (%p221) target = $region36
        $region35: #{tpu_custom_call.1} parent=31 // pred_region
          %p224 = scmp.lt.s32.totalorder %s21, 1
          %s225 = scalar_select %p224, %s21, 1
          %s226 = smul.addr %s225, 8
          %s227 = scalar_lea.vmem %s0, %s226
        $region36: #{tpu_custom_call.1} parent=31 // pred_fallthru
          _
      $region32: #{tpu_custom_call.1} parent=5 // pred_fallthru
        _
      %p228 = scmp.le.s32.totalorder 1, %s14
      %p229 = scmp.lt.s32.totalorder %s14, 3
      %p230 = pnand %p228, %p229
      %p231 = pneg %p230
      // Predicated region
      $region37: #{tpu_custom_call.1} parent=5 // pred_check
        _
      $region38: #{tpu_custom_call.1} parent=5 // pred_check_branch
        %233 = sbr.rel (%p230) target = $region40
      $region39: #{tpu_custom_call.1} parent=5 // pred_region
        %s234 = ssub.s32 %s14, 1
        %p235 = scmp.lt.s32.totalorder %s23, 1
        %s236 = scalar_select %p235, %s23, 1
        %s237 = smul.addr %s236, 8
        %s238 = scalar_lea.vmem %s0, %s237
        %p239 = pneg %p52
        %p240 = pneg %p49
        %p241 = scmp.lt.s32.totalorder %s24, 0
        %s242 = scalar_select %p241, %s24, 0
        %s243 = smul.addr %s242, 4
        %s244 = scalar_lea.vmem %s1, %s243
        %p245 = pneg %p78
        %p246 = pneg %p75
        %p247 = scmp.lt.s32.totalorder %s24, 0
        %s248 = scalar_select %p247, %s24, 0
        %s249 = scalar_lea.vmem %s2, %s248
        %p250 = pneg %p104
        %p251 = pneg %p101
        %s252 = smul.u32 8, %s24
        %p253 = scmp.lt.s32.totalorder %s252, 7
        %s254 = scalar_select %p253, %s252, 7
        %s255 = smul.addr %s254, 4
        %s256 = scalar_lea.vmem %s3, %s255
        %p257 = pneg %p130
        %p258 = pneg %p127
        %p259 = pneg %p151
        %p260 = pneg %p148
        %p261 = pneg %p177
        %p262 = pneg %p174
        %s263 = sand.u32 %s164, 1
        %s264 = scalar_lea.sflag [#allocation5], %s263
        %s265 = sand.u32 %s164, 1
        %s266 = smul.addr %s265, 8
        %s267 = scalar_lea.vmem [#allocation4], %s266
        %p268 = scmp.lt.s32.totalorder %s23, 1
        %s269 = scalar_select %p268, %s23, 1
        %s270 = smul.addr %s269, 8
        %s271 = scalar_lea.vmem %s0, %s270
        %p272 = scmp.lt.s32.totalorder %s24, 0
        %s273 = scalar_select %p272, %s24, 0
        %s274 = smul.addr %s273, 4
        %s275 = scalar_lea.vmem %s1, %s274
        %p276 = scmp.lt.s32.totalorder %s24, 0
        %s277 = scalar_select %p276, %s24, 0
        %s278 = scalar_lea.vmem %s2, %s277
        %s279 = smul.u32 8, %s24
        %p280 = scmp.lt.s32.totalorder %s279, 7
        %s281 = scalar_select %p280, %s279, 7
        %s282 = smul.addr %s281, 4
        %s283 = scalar_lea.vmem %s3, %s282
        %s284 = smul.u32 8, %s24
        %p286 = scmp.eq.s32.totalorder %s24, 0
        // Predicated region
        $region41: #{tpu_custom_call.1} parent=39 // pred_check
          %p287 = pneg %p286
        $region42: #{tpu_custom_call.1} parent=39 // pred_check_branch
          %289 = sbr.rel (%p287) target = $region44
        $region43: #{tpu_custom_call.1} parent=39 // pred_region
          %v290 = vld [vmem:[%s271] sm:$0xff]
          %vm291 = vcmask 261120
          %v292 = vsel %vm291, %v290, 0.0
          %293 = vadd.xlane.f32.xlu0 %v292
          %v294 = vpop.xlane.xlu0 %293
          %v295 = vmul.f32 %v294, 0.03125
          %v296 = vsub.f32 %v290, %v295
          %v297 = vmul.f32 %v296, %v296
          %v298 = vsel %vm291, %v297, 0.0
          %299 = vadd.xlane.f32.xlu0 %v298
          %v300 = vpop.xlane.xlu0 %299
          %v301 = vmul.f32 %v300, 0.03125
          %v302 = vadd.f32 %v301, 1e-05
          %v303 = vrsqrt.pop %v302
          %v304 = vmul.f32 %v296, %v303
          %v305 = vpack.c.bf16 %v304, %v304
          %vm306 = vcmask 257024
          %307 = vst.msk [vmem:[#allocation2] sm:$0xf] %vm306, %v305
          %308 = vst.msk [vmem:[#allocation3] sm:$0xff] %vm291, 0.0
        $region44: #{tpu_custom_call.1} parent=39 // pred_fallthru
          _
        %v309 = vld [vmem:[#allocation2] sm:$0xf]
        %v310 = vld [vmem:[%s275] sm:$0xf]
        %v311 = vld [vmem:[%s275 + $0x4] sm:$0xf]
        %v312 = vld [vmem:[%s275 + $0x8] sm:$0xf]
        %v313 = vld [vmem:[%s275 + $0xc] sm:$0xf]
        %v314 = vld [vmem:[%s278] sm:$0x1]
        %v316 = vlaneseq
        %v317 = vshrl.u32 %v316, 7
        %v318 = vsub.s32 0, %v317
        %v319 = vrot.slane %v314, %v318
        %v325 = vunpack.c.l.b16 %v310
        %v326 = vunpack.c.l.b16 %v311
        %v327 = vunpack.c.l.b16 %v312
        %v328 = vunpack.c.l.b16 %v313
        %v329 = vpack.c.b16 %v326, %v325
        %v330 = vpack.c.b16 %v328, %v327
        %vm333 = vcmask 261120
        %v335 = vsel %vm333, %v309, 0
        %337 = vmatprep.subr.bf16.mxu0 0
        %338 = vmatpush1.bf16.msra.mxu0 0
        %339 = vmatprep.subr.bf16.mxu0 0
        %340 = vmatpush1.bf16.msra.mxu0 0
        %341 = vmatprep.subr.bf16.mxu0 0
        %342 = vmatpush1.bf16.msra.mxu0 0
        %343 = vmatprep.subr.bf16.mxu0 0
        %344 = vmatpush1.bf16.msra.mxu0 0
        %345 = vmatprep.subr.bf16.mxu0 0
        %346 = vmatpush1.bf16.msra.mxu0 0
        %347 = vmatprep.subr.bf16.mxu0 0
        %348 = vmatpush1.bf16.msra.mxu0 0
        %349 = vmatprep.subr.bf16.mxu0 0
        %350 = vmatpush1.bf16.msra.mxu0 %v330
        %351 = vmatprep.subr.bf16.mxu0 0
        %352 = vmatpush1.bf16.msra.mxu0 %v329
        %353 = vmatprep.subr.bf16.mxu0 0
        %354 = vmatpush2.bf16.msra.mxu0 0
        %355 = vmatprep.subr.bf16.mxu0 0
        %356 = vmatpush2.bf16.msra.mxu0 0
        %357 = vmatprep.subr.bf16.mxu0 0
        %358 = vmatpush2.bf16.msra.mxu0 0
        %359 = vmatprep.subr.bf16.mxu0 0
        %360 = vmatpush2.bf16.msra.mxu0 0
        %361 = vmatprep.subr.bf16.mxu0 0
        %362 = vmatpush2.bf16.msra.mxu0 0
        %363 = vmatprep.subr.bf16.mxu0 0
        %364 = vmatpush2.bf16.msra.mxu0 0
        %365 = vmatprep.subr.bf16.mxu0 0
        %366 = vmatpush2.bf16.msra.mxu0 0
        %367 = vmatprep.subr.bf16.mxu0 0
        %368 = vmatpush2.bf16.msra.mxu0 0
        %369 = vmatprep.mubr.bf16.mxu0 0
        %370 = vmatmul.mubr.bf16.gmra.mxu0 %v335
        %v371 = vpop.f32.mrf.mxu0
        %v372 = vadd.f32 %v319, %v371
        %v373 = vpop.f32.mrf.mxu0
        %v374 = vpop.f32.mrf.mxu0
        %v375 = vpop.f32.mrf.mxu0
        %376 = vdwg.mxu0
        %v377 = vxor.u32 %v372, 2147483648
        %v378 = vmul.f32 %v377, 1.442695
        %v379 = vpow.pop %v378
        %v380 = vadd.f32 %v379, 1.0
        %v381 = vrcp.pop %v380
        %v382 = vmul.f32 1.0, %v381
        %v383 = vmul.f32 %v372, %v382
        %v384 = vld [vmem:[#allocation3] sm:$0xff]
        %v385 = vpack.c.bf16 %v383, %v383
        %v386 = vld [vmem:[%s283] sm:$0xf]
        %v387 = vld [vmem:[%s283 + $0x4] sm:$0xf]
        %v388 = vld [vmem:[%s283 + $0x8] sm:$0xf]
        %v389 = vld [vmem:[%s283 + $0xc] sm:$0xf]
        %v390 = vld [vmem:[%s283 + $0x10] sm:$0xf]
        %v391 = vld [vmem:[%s283 + $0x14] sm:$0xf]
        %v392 = vld [vmem:[%s283 + $0x18] sm:$0xf]
        %v393 = vld [vmem:[%s283 + $0x1c] sm:$0xf]
        %v402 = vunpack.c.l.b16 %v386
        %v403 = vunpack.c.l.b16 %v387
        %v404 = vunpack.c.l.b16 %v388
        %v405 = vunpack.c.l.b16 %v389
        %v406 = vunpack.c.l.b16 %v390
        %v407 = vunpack.c.l.b16 %v391
        %v408 = vunpack.c.l.b16 %v392
        %v409 = vunpack.c.l.b16 %v393
        %v410 = vpack.c.b16 %v403, %v402
        %v411 = vpack.c.b16 %v405, %v404
        %v412 = vpack.c.b16 %v407, %v406
        %v413 = vpack.c.b16 %v409, %v408
        %vm418 = vcmask 523264
        %v420 = vsel %vm418, %v385, 0
        %422 = vmatprep.subr.bf16.mxu0 0
        %423 = vmatpush1.bf16.msra.mxu0 0
        %424 = vmatprep.subr.bf16.mxu0 0
        %425 = vmatpush1.bf16.msra.mxu0 0
        %426 = vmatprep.subr.bf16.mxu0 0
        %427 = vmatpush1.bf16.msra.mxu0 0
        %428 = vmatprep.subr.bf16.mxu0 0
        %429 = vmatpush1.bf16.msra.mxu0 0
        %430 = vmatprep.subr.bf16.mxu0 0
        %431 = vmatpush1.bf16.msra.mxu0 %v413
        %432 = vmatprep.subr.bf16.mxu0 0
        %433 = vmatpush1.bf16.msra.mxu0 %v412
        %434 = vmatprep.subr.bf16.mxu0 0
        %435 = vmatpush1.bf16.msra.mxu0 %v411
        %436 = vmatprep.subr.bf16.mxu0 0
        %437 = vmatpush1.bf16.msra.mxu0 %v410
        %438 = vmatprep.subr.bf16.mxu0 0
        %439 = vmatpush2.bf16.msra.mxu0 0
        %440 = vmatprep.subr.bf16.mxu0 0
        %441 = vmatpush2.bf16.msra.mxu0 0
        %442 = vmatprep.subr.bf16.mxu0 0
        %443 = vmatpush2.bf16.msra.mxu0 0
        %444 = vmatprep.subr.bf16.mxu0 0
        %445 = vmatpush2.bf16.msra.mxu0 0
        %446 = vmatprep.subr.bf16.mxu0 0
        %447 = vmatpush2.bf16.msra.mxu0 0
        %448 = vmatprep.subr.bf16.mxu0 0
        %449 = vmatpush2.bf16.msra.mxu0 0
        %450 = vmatprep.subr.bf16.mxu0 0
        %451 = vmatpush2.bf16.msra.mxu0 0
        %452 = vmatprep.subr.bf16.mxu0 0
        %453 = vmatpush2.bf16.msra.mxu0 0
        %454 = vmatprep.mubr.bf16.mxu0 0
        %455 = vmatmul.mubr.bf16.gmra.mxu0 %v420
        %v456 = vpop.f32.mrf.mxu0
        %v457 = vadd.f32 0.0, %v456
        %v458 = vpop.f32.mrf.mxu0
        %v459 = vpop.f32.mrf.mxu0
        %v460 = vpop.f32.mrf.mxu0
        %461 = vdwg.mxu0
        %v462 = vadd.f32 %v384, %v457
        %463 = vst.msk [vmem:[#allocation3] sm:$0xff] %vm333, %v462
        // Predicated region
        $region45: #{tpu_custom_call.1} parent=39 // pred_check
          %p464 = pneg %p286
        $region46: #{tpu_custom_call.1} parent=39 // pred_check_branch
          %466 = sbr.rel (%p464) target = $region48
        $region47: #{tpu_custom_call.1} parent=39 // pred_region
          %v467 = vld [vmem:[#allocation3] sm:$0xff]
          %v468 = vld [vmem:[%s4] sm:$0x1]
          %v470 = vlaneseq
          %v471 = vshrl.u32 %v470, 7
          %v472 = vsub.s32 0, %v471
          %v473 = vrot.slane %v468, %v472
          %v475 = vadd.f32 %v467, %v473
          %476 = vst.msk [vmem:[%s267] sm:$0xff] %vm333, %v475
        $region48: #{tpu_custom_call.1} parent=39 // pred_fallthru
          _
        %s477 = sand.u32 %s164, 1
        %s478 = scalar_lea.sflag [#allocation5], %s477
        %s479 = sand.u32 %s164, 1
        %s480 = smul.addr %s479, 8
        %s481 = scalar_lea.vmem [#allocation4], %s480
        // Predicated region
        $region49: #{tpu_custom_call.1} parent=39 // pred_check
          %p482 = pneg %p174
        $region50: #{tpu_custom_call.1} parent=39 // pred_check_branch
          %484 = sbr.rel (%p482) target = $region52
        $region51: #{tpu_custom_call.1} parent=39 // pred_region
          %s486 = ssub.s32 128, 128
          %487 = vsyncadd %s478, %s486
          %s488 = smul.addr %s23, 128
          %s489 = scalar_lea.hbm %s5, %s488
          %s491 = sshll.u32 %s481, 4
          %s492 = int_to_ptr.vmem [resolvable:$true] %s491
          %494 = dma.vmem_to_hbm [thread:$0]  %s492, 128, %s489, %s478
        $region52: #{tpu_custom_call.1} parent=39 // pred_fallthru
          _
      $region40: #{tpu_custom_call.1} parent=5 // pred_fallthru
        _
      %p495 = scmp.le.s32.totalorder 2, %s14
      // Predicated region
      $region53: #{tpu_custom_call.1} parent=5 // pred_check
        %p496 = pneg %p495
      $region54: #{tpu_custom_call.1} parent=5 // pred_check_branch
        %498 = sbr.rel (%p496) target = $region56
      $region55: #{tpu_custom_call.1} parent=5 // pred_region
        %s499 = ssub.s32 %s14, 2
        // Predicated region
        $region57: #{tpu_custom_call.1} parent=55 // pred_check
          %p500 = pneg %p180
        $region58: #{tpu_custom_call.1} parent=55 // pred_check_branch
          %502 = sbr.rel (%p500) target = $region60
        $region59: #{tpu_custom_call.1} parent=55 // pred_region
          %s503 = sand.u32 %s165, 1
          %s504 = scalar_lea.sflag [#allocation5], %s503
          %s505 = sand.u32 %s165, 1
          %s506 = smul.addr %s505, 8
          %s507 = scalar_lea.vmem [#allocation4], %s506
          %508 = dma.done %s504, 128
        $region60: #{tpu_custom_call.1} parent=55 // pred_fallthru
          _
      $region56: #{tpu_custom_call.1} parent=5 // pred_fallthru
        _
    $region6: #{tpu_custom_call.1} parent=1 // loop_footer
      %s18 = sadd.s32 1, %s14
    $region7: #{tpu_custom_call.1} parent=1 // loop_footer_branch
      %13 = sbr.rel target = $region3
    $region8: #{tpu_custom_call.1} parent=1 // loop_exit
      _
    %509 = vsyncpa [#allocation5], 1
    %s510 = scalar_lea.sflag [#allocation5], 1
    %511 = vsyncpa %s510, 1

// kernel: tpu_custom_call.1
$region0: #{tpu_custom_call.1}
  #allocation0 [shape = 'u32[]', space=smem, size = 0x4, offset = 0x4, fixed_abs, tag = 'smem constant byte address 0x4 - core index']
  #allocation1 [shape = 'u32[144,128]{1,0:T(1,128)}', space=vmem, size = 0x12000, scoped, tag = 'internal scratch']
  #allocation2 [shape = 'bf16[8,32]{1,0:T(8,128)(2,1)}', space=vmem, size = 0x800, scoped, tag = 'scratch operand']
  #allocation3 [shape = 'f32[8,32]{1,0:T(8,128)}', space=vmem, size = 0x1000, scoped, tag = 'scratch operand']
  %s0 = inlined_call_operand.vmem [shape: f32[16,32], index: 0, kind: input, shape index: {}]
  %s1 = inlined_call_operand.vmem [shape: bf16[32,64], index: 1, kind: input, shape index: {}]
  %s2 = inlined_call_operand.vmem [shape: f32[1,64], index: 2, kind: input, shape index: {}]
  %s3 = inlined_call_operand.vmem [shape: bf16[64,32], index: 3, kind: input, shape index: {}]
  %s4 = inlined_call_operand.vmem [shape: f32[1,32], index: 4, kind: input, shape index: {}]
  %s5 = inlined_call_operand.hbm [shape: f32[16,32], index: 5, kind: output, shape index: {}]
  %s6 = sld [smem:[#allocation0]]
  $region61: #{tpu_custom_call.1} parent=0
    _
  %s8 = ssub.s32 1, %s6
  %s9 = scalar_select 0, %s8, %s6
  $region1: #{tpu_custom_call.1} parent=0
    #allocation4 [shape = 'u8[8192]{0}', space=vmem, size = 0x2000, scoped, tag = 'output window, operand 0']
    #allocation5 [shape = 's32[2]{0}', space=sflag, size = 0x8, scoped, tag = 'scoped memory for tpu_custom_call.1']
    %10 = vsyncpa [#allocation5], 0
    %s11 = scalar_lea.sflag [#allocation5], 1
    %12 = vsyncpa %s11, 0
    loop: start=0, step=1, limit=4
    $region2: #{tpu_custom_call.1} parent=1 // loop_pre_header
      _
    $region3: #{tpu_custom_call.1} parent=1 // loop_header
      %s14 = sphi 0, %s18
      %p15 = scmp.ge.s32.totalorder %s14, 4
      %s21 = sphi 0, %s33
      %s22 = sphi 0, %s29
      %s23 = sphi 0, %s21
      %s24 = sphi 0, %s22
      %s25 = sphi 0, %s23
      %s26 = sphi 0, %s24
      %s36 = sphi 0, %s38
      %s39 = sphi 0, %s36
      %s40 = sphi 0, %s39
      %s56 = sphi 0, %s40
      %s62 = sphi 0, %s64
      %s65 = sphi 0, %s62
      %s66 = sphi 0, %s65
      %s82 = sphi 0, %s66
      %s88 = sphi 0, %s90
      %s91 = sphi 0, %s88
      %s92 = sphi 0, %s91
      %s108 = sphi 0, %s92
      %s114 = sphi 0, %s116
      %s117 = sphi 0, %s114
      %s118 = sphi 0, %s117
      %s134 = sphi 0, %s118
      %s138 = sphi 0, %s138
      %s140 = sphi 0, %s138
      %s141 = sphi 0, %s140
      %s155 = sphi 0, %s141
      %s161 = sphi 0, %s163
      %s164 = sphi 0, %s161
      %s165 = sphi 0, %s164
      %s181 = sphi 0, %s165
    $region4: #{tpu_custom_call.1} parent=1 // loop_header_branch
      %17 = sbr.rel (%p15) target = $region8
    $region5: #{tpu_custom_call.1} parent=1 // loop_body
      %s19 = ssub.s32 %s14, 1
      %s20 = ssub.s32 %s14, 2
      %s27 = sadd.s32 1, %s22
      %p28 = scmp.ge.s32.totalorder %s27, 1
      %s29 = scalar_select %p28, 0, %s27
      %s30 = sadd.s32 1, %s21
      %s31 = scalar_select %p28, %s30, %s21
      %p32 = scmp.ge.s32.totalorder %s31, 2
      %s33 = scalar_select %p32, 0, %s31
      %s34 = ssub.s32 %s21, %s33
      %p35 = scmp.eq.s32.totalorder %s34, 0
      %s37 = sadd.s32 %s36, 1
      %s38 = scalar_select %p35, %s36, %s37
      %p41 = pneg %p35
      %p42 = scmp.eq.s32.totalorder %s14, 1
      %p43 = por %p41, %p42
      %p44 = scmp.ne.s32.totalorder %s36, %s39
      %p45 = scmp.eq.s32.totalorder %s14, 0
      %p46 = por %p44, %p45
      %p47 = scmp.ne.s32.totalorder %s36, %s39
      %p48 = scmp.eq.s32.totalorder %s19, 1
      %p49 = por %p47, %p48
      %p50 = scmp.ne.s32.totalorder %s39, %s40
      %p51 = scmp.eq.s32.totalorder %s19, 0
      %p52 = por %p50, %p51
      %p53 = scmp.ne.s32.totalorder %s39, %s40
      %p54 = scmp.eq.s32.totalorder %s20, 1
      %p55 = por %p53, %p54
      %p57 = scmp.ne.s32.totalorder %s40, %s56
      %p58 = scmp.eq.s32.totalorder %s20, 0
      %p59 = por %p57, %p58
      %s60 = ssub.s32 %s22, %s29
      %p61 = scmp.eq.s32.totalorder %s60, 0
      %s63 = sadd.s32 %s62, 1
      %s64 = scalar_select %p61, %s62, %s63
      %p67 = pneg %p61
      %p68 = scmp.eq.s32.totalorder %s14, 1
      %p69 = por %p67, %p68
      %p70 = scmp.ne.s32.totalorder %s62, %s65
      %p71 = scmp.eq.s32.totalorder %s14, 0
      %p72 = por %p70, %p71
      %p73 = scmp.ne.s32.totalorder %s62, %s65
      %p74 = scmp.eq.s32.totalorder %s19, 1
      %p75 = por %p73, %p74
      %p76 = scmp.ne.s32.totalorder %s65, %s66
      %p77 = scmp.eq.s32.totalorder %s19, 0
      %p78 = por %p76, %p77
      %p79 = scmp.ne.s32.totalorder %s65, %s66
      %p80 = scmp.eq.s32.totalorder %s20, 1
      %p81 = por %p79, %p80
      %p83 = scmp.ne.s32.totalorder %s66, %s82
      %p84 = scmp.eq.s32.totalorder %s20, 0
      %p85 = por %p83, %p84
      %s86 = ssub.s32 %s22, %s29
      %p87 = scmp.eq.s32.totalorder %s86, 0
      %s89 = sadd.s32 %s88, 1
      %s90 = scalar_select %p87, %s88, %s89
      %p93 = pneg %p87
      %p94 = scmp.eq.s32.totalorder %s14, 1
      %p95 = por %p93, %p94
      %p96 = scmp.ne.s32.totalorder %s88, %s91
      %p97 = scmp.eq.s32.totalorder %s14, 0
      %p98 = por %p96, %p97
      %p99 = scmp.ne.s32.totalorder %s88, %s91
      %p100 = scmp.eq.s32.totalorder %s19, 1
      %p101 = por %p99, %p100
      %p102 = scmp.ne.s32.totalorder %s91, %s92
      %p103 = scmp.eq.s32.totalorder %s19, 0
      %p104 = por %p102, %p103
      %p105 = scmp.ne.s32.totalorder %s91, %s92
      %p106 = scmp.eq.s32.totalorder %s20, 1
      %p107 = por %p105, %p106
      %p109 = scmp.ne.s32.totalorder %s92, %s108
      %p110 = scmp.eq.s32.totalorder %s20, 0
      %p111 = por %p109, %p110
      %s112 = ssub.s32 %s22, %s29
      %p113 = scmp.eq.s32.totalorder %s112, 0
      %s115 = sadd.s32 %s114, 1
      %s116 = scalar_select %p113, %s114, %s115
      %p119 = pneg %p113
      %p120 = scmp.eq.s32.totalorder %s14, 1
      %p121 = por %p119, %p120
      %p122 = scmp.ne.s32.totalorder %s114, %s117
      %p123 = scmp.eq.s32.totalorder %s14, 0
      %p124 = por %p122, %p123
      %p125 = scmp.ne.s32.totalorder %s114, %s117
      %p126 = scmp.eq.s32.totalorder %s19, 1
      %p127 = por %p125, %p126
      %p128 = scmp.ne.s32.totalorder %s117, %s118
      %p129 = scmp.eq.s32.totalorder %s19, 0
      %p130 = por %p128, %p129
      %p131 = scmp.ne.s32.totalorder %s117, %s118
      %p132 = scmp.eq.s32.totalorder %s20, 1
      %p133 = por %p131, %p132
      %p135 = scmp.ne.s32.totalorder %s118, %s134
      %p136 = scmp.eq.s32.totalorder %s20, 0
      %p137 = por %p135, %p136
      %s139 = sadd.s32 %s138, 1
      %p142 = scmp.eq.s32.totalorder %s14, 1
      %p143 = scmp.ne.s32.totalorder %s138, %s140
      %p144 = scmp.eq.s32.totalorder %s14, 0
      %p145 = por %p143, %p144
      %p146 = scmp.ne.s32.totalorder %s138, %s140
      %p147 = scmp.eq.s32.totalorder %s19, 1
      %p148 = por %p146, %p147
      %p149 = scmp.ne.s32.totalorder %s140, %s141
      %p150 = scmp.eq.s32.totalorder %s19, 0
      %p151 = por %p149, %p150
      %p152 = scmp.ne.s32.totalorder %s140, %s141
      %p153 = scmp.eq.s32.totalorder %s20, 1
      %p154 = por %p152, %p153
      %p156 = scmp.ne.s32.totalorder %s141, %s155
      %p157 = scmp.eq.s32.totalorder %s20, 0
      %p158 = por %p156, %p157
      %s159 = ssub.s32 %s21, %s33
      %p160 = scmp.eq.s32.totalorder %s159, 0
      %s162 = sadd.s32 %s161, 1
      %s163 = scalar_select %p160, %s161, %s162
      %p166 = pneg %p160
      %p167 = scmp.eq.s32.totalorder %s14, 1
      %p168 = por %p166, %p167
      %p169 = scmp.ne.s32.totalorder %s161, %s164
      %p170 = scmp.eq.s32.totalorder %s14, 0
      %p171 = por %p169, %p170
      %p172 = scmp.ne.s32.totalorder %s161, %s164
      %p173 = scmp.eq.s32.totalorder %s19, 1
      %p174 = por %p172, %p173
      %p175 = scmp.ne.s32.totalorder %s164, %s165
      %p176 = scmp.eq.s32.totalorder %s19, 0
      %p177 = por %p175, %p176
      %p178 = scmp.ne.s32.totalorder %s164, %s165
      %p179 = scmp.eq.s32.totalorder %s20, 1
      %p180 = por %p178, %p179
      %p182 = scmp.ne.s32.totalorder %s165, %s181
      %p183 = scmp.eq.s32.totalorder %s20, 0
      %p184 = por %p182, %p183
      %p185 = scmp.le.s32.totalorder 1, %s14
      %p186 = scmp.lt.s32.totalorder %s14, 3
      %p187 = pnand %p185, %p186
      %p188 = pneg %p187
      // Predicated region
      $region9: #{tpu_custom_call.1} parent=5 // pred_check
        _
      $region10: #{tpu_custom_call.1} parent=5 // pred_check_branch
        %190 = sbr.rel (%p187) target = $region12
      $region11: #{tpu_custom_call.1} parent=5 // pred_region
        %s191 = ssub.s32 %s14, 1
        // Predicated region
        $region13: #{tpu_custom_call.1} parent=11 // pred_check
          %p192 = pneg %p78
        $region14: #{tpu_custom_call.1} parent=11 // pred_check_branch
          %194 = sbr.rel (%p192) target = $region16
        $region15: #{tpu_custom_call.1} parent=11 // pred_region
          %p195 = scmp.lt.s32.totalorder %s24, 0
          %s196 = scalar_select %p195, %s24, 0
          %s197 = smul.addr %s196, 4
          %s198 = scalar_lea.vmem %s1, %s197
        $region16: #{tpu_custom_call.1} parent=11 // pred_fallthru
          _
        // Predicated region
        $region17: #{tpu_custom_call.1} parent=11 // pred_check
          %p199 = pneg %p104
        $region18: #{tpu_custom_call.1} parent=11 // pred_check_branch
          %201 = sbr.rel (%p199) target = $region20
        $region19: #{tpu_custom_call.1} parent=11 // pred_region
          %p202 = scmp.lt.s32.totalorder %s24, 0
          %s203 = scalar_select %p202, %s24, 0
          %s204 = scalar_lea.vmem %s2, %s203
        $region20: #{tpu_custom_call.1} parent=11 // pred_fallthru
          _
        // Predicated region
        $region21: #{tpu_custom_call.1} parent=11 // pred_check
          %p205 = pneg %p130
        $region22: #{tpu_custom_call.1} parent=11 // pred_check_branch
          %207 = sbr.rel (%p205) target = $region24
        $region23: #{tpu_custom_call.1} parent=11 // pred_region
          %s208 = smul.u32 8, %s24
          %p209 = scmp.lt.s32.totalorder %s208, 7
          %s210 = scalar_select %p209, %s208, 7
          %s211 = smul.addr %s210, 4
          %s212 = scalar_lea.vmem %s3, %s211
          %s213 = smul.u32 8, %s24
        $region24: #{tpu_custom_call.1} parent=11 // pred_fallthru
          _
        // Predicated region
        $region25: #{tpu_custom_call.1} parent=11 // pred_check
          %p214 = pneg %p151
        $region26: #{tpu_custom_call.1} parent=11 // pred_check_branch
          %216 = sbr.rel (%p214) target = $region28
        $region27: #{tpu_custom_call.1} parent=11 // pred_region
          _
        $region28: #{tpu_custom_call.1} parent=11 // pred_fallthru
          _
      $region12: #{tpu_custom_call.1} parent=5 // pred_fallthru
        _
      %p217 = scmp.lt.s32.totalorder %s14, 2
      // Predicated region
      $region29: #{tpu_custom_call.1} parent=5 // pred_check
        %p218 = pneg %p217
      $region30: #{tpu_custom_call.1} parent=5 // pred_check_branch
        %220 = sbr.rel (%p218) target = $region32
      $region31: #{tpu_custom_call.1} parent=5 // pred_region
        // Predicated region
        $region33: #{tpu_custom_call.1} parent=31 // pred_check
          %p221 = pneg %p46
        $region34: #{tpu_custom_call.1} parent=31 // pred_check_branch
          %223 = sbr.rel (%p221) target = $region36
        $region35: #{tpu_custom_call.1} parent=31 // pred_region
          %p224 = scmp.lt.s32.totalorder %s21, 1
          %s225 = scalar_select %p224, %s21, 1
          %s226 = smul.addr %s225, 8
          %s227 = scalar_lea.vmem %s0, %s226
        $region36: #{tpu_custom_call.1} parent=31 // pred_fallthru
          _
      $region32: #{tpu_custom_call.1} parent=5 // pred_fallthru
        _
      %p228 = scmp.le.s32.totalorder 1, %s14
      %p229 = scmp.lt.s32.totalorder %s14, 3
      %p230 = pnand %p228, %p229
      %p231 = pneg %p230
      // Predicated region
      $region37: #{tpu_custom_call.1} parent=5 // pred_check
        _
      $region38: #{tpu_custom_call.1} parent=5 // pred_check_branch
        %233 = sbr.rel (%p230) target = $region40
      $region39: #{tpu_custom_call.1} parent=5 // pred_region
        %s234 = ssub.s32 %s14, 1
        %p235 = scmp.lt.s32.totalorder %s23, 1
        %s236 = scalar_select %p235, %s23, 1
        %s237 = smul.addr %s236, 8
        %s238 = scalar_lea.vmem %s0, %s237
        %p239 = pneg %p52
        %p240 = pneg %p49
        %p241 = scmp.lt.s32.totalorder %s24, 0
        %s242 = scalar_select %p241, %s24, 0
        %s243 = smul.addr %s242, 4
        %s244 = scalar_lea.vmem %s1, %s243
        %p245 = pneg %p78
        %p246 = pneg %p75
        %p247 = scmp.lt.s32.totalorder %s24, 0
        %s248 = scalar_select %p247, %s24, 0
        %s249 = scalar_lea.vmem %s2, %s248
        %p250 = pneg %p104
        %p251 = pneg %p101
        %s252 = smul.u32 8, %s24
        %p253 = scmp.lt.s32.totalorder %s252, 7
        %s254 = scalar_select %p253, %s252, 7
        %s255 = smul.addr %s254, 4
        %s256 = scalar_lea.vmem %s3, %s255
        %p257 = pneg %p130
        %p258 = pneg %p127
        %p259 = pneg %p151
        %p260 = pneg %p148
        %p261 = pneg %p177
        %p262 = pneg %p174
        %s263 = sand.u32 %s164, 1
        %s264 = scalar_lea.sflag [#allocation5], %s263
        %s265 = sand.u32 %s164, 1
        %s266 = smul.addr %s265, 8
        %s267 = scalar_lea.vmem [#allocation4], %s266
        %p268 = scmp.lt.s32.totalorder %s23, 1
        %s269 = scalar_select %p268, %s23, 1
        %s270 = smul.addr %s269, 8
        %s271 = scalar_lea.vmem %s0, %s270
        %p272 = scmp.lt.s32.totalorder %s24, 0
        %s273 = scalar_select %p272, %s24, 0
        %s274 = smul.addr %s273, 4
        %s275 = scalar_lea.vmem %s1, %s274
        %p276 = scmp.lt.s32.totalorder %s24, 0
        %s277 = scalar_select %p276, %s24, 0
        %s278 = scalar_lea.vmem %s2, %s277
        %s279 = smul.u32 8, %s24
        %p280 = scmp.lt.s32.totalorder %s279, 7
        %s281 = scalar_select %p280, %s279, 7
        %s282 = smul.addr %s281, 4
        %s283 = scalar_lea.vmem %s3, %s282
        %s284 = smul.u32 8, %s24
        %p286 = scmp.eq.s32.totalorder %s24, 0
        // Predicated region
        $region41: #{tpu_custom_call.1} parent=39 // pred_check
          %p287 = pneg %p286
        $region42: #{tpu_custom_call.1} parent=39 // pred_check_branch
          %289 = sbr.rel (%p287) target = $region44
        $region43: #{tpu_custom_call.1} parent=39 // pred_region
          %v290 = vld [vmem:[%s271] sm:$0xff]
          %vm291 = vcmask 261120
          %v292 = vsel %vm291, %v290, 0.0
          %293 = vadd.xlane.f32.xlu0 %v292
          %v294 = vpop.xlane.xlu0 %293
          %v295 = vmul.f32 %v294, 0.03125
          %v296 = vsub.f32 %v290, %v295
          %v297 = vmul.f32 %v296, %v296
          %v298 = vsel %vm291, %v297, 0.0
          %299 = vadd.xlane.f32.xlu0 %v298
          %v300 = vpop.xlane.xlu0 %299
          %v301 = vmul.f32 %v300, 0.03125
          %v302 = vadd.f32 %v301, 1e-05
          %v303 = vrsqrt.pop %v302
          %v304 = vmul.f32 %v296, %v303
          %v305 = vpack.c.bf16 %v304, %v304
          %vm306 = vcmask 257024
          %307 = vst.msk [vmem:[#allocation2] sm:$0xf] %vm306, %v305
          %308 = vst.msk [vmem:[#allocation3] sm:$0xff] %vm291, 0.0
        $region44: #{tpu_custom_call.1} parent=39 // pred_fallthru
          _
        %v309 = vld [vmem:[#allocation2] sm:$0xf]
        %v310 = vld [vmem:[%s275] sm:$0xf]
        %v311 = vld [vmem:[%s275 + $0x4] sm:$0xf]
        %v312 = vld [vmem:[%s275 + $0x8] sm:$0xf]
        %v313 = vld [vmem:[%s275 + $0xc] sm:$0xf]
        %v314 = vld [vmem:[%s278] sm:$0x1]
        %v316 = vlaneseq
        %v317 = vshrl.u32 %v316, 7
        %v318 = vsub.s32 0, %v317
        %v319 = vrot.slane %v314, %v318
        %v325 = vunpack.c.l.b16 %v310
        %v326 = vunpack.c.l.b16 %v311
        %v327 = vunpack.c.l.b16 %v312
        %v328 = vunpack.c.l.b16 %v313
        %v329 = vpack.c.b16 %v326, %v325
        %v330 = vpack.c.b16 %v328, %v327
        %vm333 = vcmask 261120
        %v335 = vsel %vm333, %v309, 0
        %337 = vmatprep.subr.bf16.mxu0 0
        %338 = vmatpush1.bf16.msra.mxu0 0
        %339 = vmatprep.subr.bf16.mxu0 0
        %340 = vmatpush1.bf16.msra.mxu0 0
        %341 = vmatprep.subr.bf16.mxu0 0
        %342 = vmatpush1.bf16.msra.mxu0 0
        %343 = vmatprep.subr.bf16.mxu0 0
        %344 = vmatpush1.bf16.msra.mxu0 0
        %345 = vmatprep.subr.bf16.mxu0 0
        %346 = vmatpush1.bf16.msra.mxu0 0
        %347 = vmatprep.subr.bf16.mxu0 0
        %348 = vmatpush1.bf16.msra.mxu0 0
        %349 = vmatprep.subr.bf16.mxu0 0
        %350 = vmatpush1.bf16.msra.mxu0 %v330
        %351 = vmatprep.subr.bf16.mxu0 0
        %352 = vmatpush1.bf16.msra.mxu0 %v329
        %353 = vmatprep.subr.bf16.mxu0 0
        %354 = vmatpush2.bf16.msra.mxu0 0
        %355 = vmatprep.subr.bf16.mxu0 0
        %356 = vmatpush2.bf16.msra.mxu0 0
        %357 = vmatprep.subr.bf16.mxu0 0
        %358 = vmatpush2.bf16.msra.mxu0 0
        %359 = vmatprep.subr.bf16.mxu0 0
        %360 = vmatpush2.bf16.msra.mxu0 0
        %361 = vmatprep.subr.bf16.mxu0 0
        %362 = vmatpush2.bf16.msra.mxu0 0
        %363 = vmatprep.subr.bf16.mxu0 0
        %364 = vmatpush2.bf16.msra.mxu0 0
        %365 = vmatprep.subr.bf16.mxu0 0
        %366 = vmatpush2.bf16.msra.mxu0 0
        %367 = vmatprep.subr.bf16.mxu0 0
        %368 = vmatpush2.bf16.msra.mxu0 0
        %369 = vmatprep.mubr.bf16.mxu0 0
        %370 = vmatmul.mubr.bf16.gmra.mxu0 %v335
        %v371 = vpop.f32.mrf.mxu0
        %v372 = vadd.f32 %v319, %v371
        %v373 = vpop.f32.mrf.mxu0
        %v374 = vpop.f32.mrf.mxu0
        %v375 = vpop.f32.mrf.mxu0
        %376 = vdwg.mxu0
        %v377 = vxor.u32 %v372, 2147483648
        %v378 = vmul.f32 %v377, 1.442695
        %v379 = vpow.pop %v378
        %v380 = vadd.f32 %v379, 1.0
        %v381 = vrcp.pop %v380
        %v382 = vmul.f32 1.0, %v381
        %v383 = vmul.f32 %v372, %v382
        %v384 = vld [vmem:[#allocation3] sm:$0xff]
        %v385 = vpack.c.bf16 %v383, %v383
        %v386 = vld [vmem:[%s283] sm:$0xf]
        %v387 = vld [vmem:[%s283 + $0x4] sm:$0xf]
        %v388 = vld [vmem:[%s283 + $0x8] sm:$0xf]
        %v389 = vld [vmem:[%s283 + $0xc] sm:$0xf]
        %v390 = vld [vmem:[%s283 + $0x10] sm:$0xf]
        %v391 = vld [vmem:[%s283 + $0x14] sm:$0xf]
        %v392 = vld [vmem:[%s283 + $0x18] sm:$0xf]
        %v393 = vld [vmem:[%s283 + $0x1c] sm:$0xf]
        %v402 = vunpack.c.l.b16 %v386
        %v403 = vunpack.c.l.b16 %v387
        %v404 = vunpack.c.l.b16 %v388
        %v405 = vunpack.c.l.b16 %v389
        %v406 = vunpack.c.l.b16 %v390
        %v407 = vunpack.c.l.b16 %v391
        %v408 = vunpack.c.l.b16 %v392
        %v409 = vunpack.c.l.b16 %v393
        %v410 = vpack.c.b16 %v403, %v402
        %v411 = vpack.c.b16 %v405, %v404
        %v412 = vpack.c.b16 %v407, %v406
        %v413 = vpack.c.b16 %v409, %v408
        %vm418 = vcmask 523264
        %v420 = vsel %vm418, %v385, 0
        %422 = vmatprep.subr.bf16.mxu0 0
        %423 = vmatpush1.bf16.msra.mxu0 0
        %424 = vmatprep.subr.bf16.mxu0 0
        %425 = vmatpush1.bf16.msra.mxu0 0
        %426 = vmatprep.subr.bf16.mxu0 0
        %427 = vmatpush1.bf16.msra.mxu0 0
        %428 = vmatprep.subr.bf16.mxu0 0
        %429 = vmatpush1.bf16.msra.mxu0 0
        %430 = vmatprep.subr.bf16.mxu0 0
        %431 = vmatpush1.bf16.msra.mxu0 %v413
        %432 = vmatprep.subr.bf16.mxu0 0
        %433 = vmatpush1.bf16.msra.mxu0 %v412
        %434 = vmatprep.subr.bf16.mxu0 0
        %435 = vmatpush1.bf16.msra.mxu0 %v411
        %436 = vmatprep.subr.bf16.mxu0 0
        %437 = vmatpush1.bf16.msra.mxu0 %v410
        %438 = vmatprep.subr.bf16.mxu0 0
        %439 = vmatpush2.bf16.msra.mxu0 0
        %440 = vmatprep.subr.bf16.mxu0 0
        %441 = vmatpush2.bf16.msra.mxu0 0
        %442 = vmatprep.subr.bf16.mxu0 0
        %443 = vmatpush2.bf16.msra.mxu0 0
        %444 = vmatprep.subr.bf16.mxu0 0
        %445 = vmatpush2.bf16.msra.mxu0 0
        %446 = vmatprep.subr.bf16.mxu0 0
        %447 = vmatpush2.bf16.msra.mxu0 0
        %448 = vmatprep.subr.bf16.mxu0 0
        %449 = vmatpush2.bf16.msra.mxu0 0
        %450 = vmatprep.subr.bf16.mxu0 0
        %451 = vmatpush2.bf16.msra.mxu0 0
        %452 = vmatprep.subr.bf16.mxu0 0
        %453 = vmatpush2.bf16.msra.mxu0 0
        %454 = vmatprep.mubr.bf16.mxu0 0
        %455 = vmatmul.mubr.bf16.gmra.mxu0 %v420
        %v456 = vpop.f32.mrf.mxu0
        %v457 = vadd.f32 0.0, %v456
        %v458 = vpop.f32.mrf.mxu0
        %v459 = vpop.f32.mrf.mxu0
        %v460 = vpop.f32.mrf.mxu0
        %461 = vdwg.mxu0
        %v462 = vadd.f32 %v384, %v457
        %463 = vst.msk [vmem:[#allocation3] sm:$0xff] %vm333, %v462
        // Predicated region
        $region45: #{tpu_custom_call.1} parent=39 // pred_check
          %p464 = pneg %p286
        $region46: #{tpu_custom_call.1} parent=39 // pred_check_branch
          %466 = sbr.rel (%p464) target = $region48
        $region47: #{tpu_custom_call.1} parent=39 // pred_region
          %v467 = vld [vmem:[#allocation3] sm:$0xff]
          %v468 = vld [vmem:[%s4] sm:$0x1]
          %v470 = vlaneseq
          %v471 = vshrl.u32 %v470, 7
          %v472 = vsub.s32 0, %v471
          %v473 = vrot.slane %v468, %v472
          %v475 = vadd.f32 %v467, %v473
          %476 = vst.msk [vmem:[%s267] sm:$0xff] %vm333, %v475
        $region48: #{tpu_custom_call.1} parent=39 // pred_fallthru
          _
        %s477 = sand.u32 %s164, 1
        %s478 = scalar_lea.sflag [#allocation5], %s477
        %s479 = sand.u32 %s164, 1
        %s480 = smul.addr %s479, 8
        %s481 = scalar_lea.vmem [#allocation4], %s480
        // Predicated region
        $region49: #{tpu_custom_call.1} parent=39 // pred_check
          %p482 = pneg %p174
        $region50: #{tpu_custom_call.1} parent=39 // pred_check_branch
          %484 = sbr.rel (%p482) target = $region52
        $region51: #{tpu_custom_call.1} parent=39 // pred_region
          %s486 = ssub.s32 128, 128
          %487 = vsyncadd %s478, %s486
          %s488 = smul.addr %s23, 128
          %s489 = scalar_lea.hbm %s5, %s488
          %s491 = sshll.u32 %s481, 4
          %s492 = int_to_ptr.vmem [resolvable:$true] %s491
          %494 = dma.vmem_to_hbm [thread:$0]  %s492, 128, %s489, %s478
        $region52: #{tpu_custom_call.1} parent=39 // pred_fallthru
          _
      $region40: #{tpu_custom_call.1} parent=5 // pred_fallthru
        _
      %p495 = scmp.le.s32.totalorder 2, %s14
      // Predicated region
      $region53: #{tpu_custom_call.1} parent=5 // pred_check
        %p496 = pneg %p495
      $region54: #{tpu_custom_call.1} parent=5 // pred_check_branch
        %498 = sbr.rel (%p496) target = $region56
      $region55: #{tpu_custom_call.1} parent=5 // pred_region
        %s499 = ssub.s32 %s14, 2
        // Predicated region
        $region57: #{tpu_custom_call.1} parent=55 // pred_check
          %p500 = pneg %p180
        $region58: #{tpu_custom_call.1} parent=55 // pred_check_branch
          %502 = sbr.rel (%p500) target = $region60
        $region59: #{tpu_custom_call.1} parent=55 // pred_region
          %s503 = sand.u32 %s165, 1
          %s504 = scalar_lea.sflag [#allocation5], %s503
          %s505 = sand.u32 %s165, 1
          %s506 = smul.addr %s505, 8
          %s507 = scalar_lea.vmem [#allocation4], %s506
          %508 = dma.done %s504, 128
        $region60: #{tpu_custom_call.1} parent=55 // pred_fallthru
          _
      $region56: #{tpu_custom_call.1} parent=5 // pred_fallthru
        _
    $region6: #{tpu_custom_call.1} parent=1 // loop_footer
      %s18 = sadd.s32 1, %s14
    $region7: #{tpu_custom_call.1} parent=1 // loop_footer_branch
      %13 = sbr.rel target = $region3
    $region8: #{tpu_custom_call.1} parent=1 // loop_exit
      _
    %509 = vsyncpa [#allocation5], 1
    %s510 = scalar_lea.sflag [#allocation5], 1
    %511 = vsyncpa %s510, 1

</llo_original>
